<compile_context>
chip_gen: v7x
topology: tpu7x:2x2x1
jax: 0.10.0
libtpu: 0.0.40
codegen_flags: <defaults>
</compile_context>

<pallas_src>
import functools

import jax
import jax.numpy as jnp
from jax.experimental import pallas as pl
from jax.experimental.pallas import tpu as pltpu


def _svm_kernel(x_ref, sv2g_ref, neg_gsvsq_ref, w_ref, b_ref, o_ref, *, gamma):
    """One batch tile of the RBF-kernel SVM forward pass.

    x_ref        : (TN, D) VMEM -- streamed x tile, native row-major layout
    sv2g_ref     : (M, D)  VMEM -- support vectors pre-scaled by 2*gamma (resident)
    neg_gsvsq_ref: (M, 1)  VMEM -- precomputed -gamma * ||sv_j||^2 (resident)
    w_ref        : (1, M)  VMEM -- Linear weight, lane-dense row (resident)
    b_ref        : (1,)    SMEM -- Linear bias scalar
    o_ref        : (1, TN) VMEM -- output row (lane-dense stores)
    """
    # Single in-kernel transpose so everything downstream is lane-dense along
    # the batch axis (lands on the otherwise-idle XLU slot).
    xt = x_ref[...].T                                               # (D, TN)

    # Cross terms on the MXU with the 2*gamma factor pre-folded into sv:
    # (M, D) @ (D, TN) -> (M, TN) == 2*gamma*<sv_j, x_i>.
    cross = jnp.dot(sv2g_ref[...], xt, preferred_element_type=jnp.float32)

    # -gamma * ||x||^2 as a lane-dense (1, TN) row (row-sized scaling only).
    neg_g_xsq = jnp.sum(xt * xt, axis=0, keepdims=True) * (-gamma)

    # Fused RBF exponent, clamped to <= 0 (true squared distances are >= 0).
    e = jnp.minimum(cross + neg_gsvsq_ref[...] + neg_g_xsq, 0.0)
    k = jnp.exp(e)                                                  # (M, TN)

    # Linear head: (1, M) @ (M, TN) -> (1, TN), lane-dense result.
    out = jnp.dot(w_ref[...], k, preferred_element_type=jnp.float32)
    o_ref[...] = out + b_ref[0]


def _vmem_budget_bytes():
    """Generation-aware VMEM numbers (v7x only has 64 MiB physical VMEM)."""
    try:
        cap = int(pltpu.get_tpu_info().vmem_capacity_bytes)
    except Exception:
        cap = 64 * 1024 * 1024  # conservative fallback, safe on every chip
    return cap // 4, cap // 2   # (tile-sizing budget, compiler vmem limit)


def _choose_tile_n(n, m, d, vmem_budget_bytes):
    """Lane-aligned batch tile: as large as VMEM allows, balanced across grid
    steps, and >= 2 tiles for mid-sized batches so v7x's 2 TCs both get work."""
    # Per batch column: double-buffered x-tile column + ~3 (M,)-sized temporaries.
    per_col_bytes = 4 * (3 * m + 2 * d)
    cap = vmem_budget_bytes // max(per_col_bytes, 1)
    cap = max(128, min(2048, (cap // 128) * 128))
    n_up = ((n + 127) // 128) * 128
    if n_up <= cap:
        if n_up >= 256:
            # Split mid-sized batches across two grid steps (v7x megacore).
            return min(cap, ((n_up // 2 + 127) // 128) * 128)
        return n_up
    # Multi-tile: balance so the last tile isn't mostly padding.
    num_tiles = -(-n // cap)
    tn = ((-(-n // num_tiles) + 127) // 128) * 128
    return max(128, min(cap, tn))


def kernel_svm_forward(x, support_vectors, weight, bias, gamma=1.0):
    """x: (N, D), support_vectors: (M, D), weight: (1, M), bias: (1,) -> (N, 1)."""
    n, d = x.shape
    m, d2 = support_vectors.shape
    assert d == d2
    assert weight.shape == (1, m)
    assert bias.shape == (1,)

    gamma = float(gamma)
    x = x.astype(jnp.float32)
    sv = support_vectors.astype(jnp.float32)
    # Pre-fold constants into the tiny resident operands (not the streamed x).
    sv2g = (2.0 * gamma) * sv                                        # (M, D)
    neg_gsvsq = (-gamma) * jnp.sum(sv * sv, axis=-1, keepdims=True)  # (M, 1)
    w_row = weight.astype(jnp.float32)                               # (1, M)
    b = bias.astype(jnp.float32).reshape((1,))

    budget, vmem_limit = _vmem_budget_bytes()
    tn = _choose_tile_n(n, m, d, budget)
    grid = (pl.cdiv(n, tn),)

    out_row = pl.pallas_call(
        functools.partial(_svm_kernel, gamma=gamma),
        out_shape=jax.ShapeDtypeStruct((1, n), jnp.float32),
        grid_spec=pltpu.PrefetchScalarGridSpec(
            num_scalar_prefetch=0,
            grid=grid,
            in_specs=[
                pl.BlockSpec((tn, d), lambda i: (i, 0)),   # streamed x tile (native layout)
                pl.BlockSpec((m, d), lambda i: (0, 0)),    # resident 2*gamma*sv
                pl.BlockSpec((m, 1), lambda i: (0, 0)),    # resident -gamma*||sv||^2
                pl.BlockSpec((1, m), lambda i: (0, 0)),    # resident weight row
                pl.BlockSpec(memory_space=pltpu.MemorySpace.SMEM),  # bias scalar
            ],
            out_specs=pl.BlockSpec((1, tn), lambda i: (0, i)),
        ),
        compiler_params=pltpu.CompilerParams(
            dimension_semantics=("parallel",),
            vmem_limit_bytes=vmem_limit,
        ),
    )(x, sv2g, neg_gsvsq, w_row, b)

    # (1, N) -> (N, 1) is a free reshape (identical contiguous layout).
    return out_row.reshape(n, 1)


def kernel_svm_reference(x, support_vectors, weight, bias, gamma=1.0):
    """Pure-JAX reference mirroring the PyTorch module."""
    diff = x[:, None, :] - support_vectors[None, :, :]
    d2 = jnp.sum(diff * diff, axis=-1)
    k = jnp.exp(-gamma * d2)
    return k @ weight.T + bias


if __name__ == "__main__":
    # Small shapes: input_dim = 32 (=> 32 support vectors, feature dim 32), batch = 8.
    N, D = 8, 32
    M = D  # number of support vectors must equal input_dim of the Linear layer
    gamma = 1.0

    key = jax.random.PRNGKey(0)
    kx, ks, kw, kb = jax.random.split(key, 4)
    x = jax.random.normal(kx, (N, D), dtype=jnp.float32)
    support_vectors = jax.random.normal(ks, (M, D), dtype=jnp.float32)
    weight = jax.random.uniform(kw, (1, M), minval=-0.1, maxval=0.1,
                                dtype=jnp.float32)
    bias = jax.random.uniform(kb, (1,), minval=-0.1, maxval=0.1,
                              dtype=jnp.float32)

    out = kernel_svm_forward(x, support_vectors, weight, bias, gamma)
    out = jax.block_until_ready(out)
    ref = kernel_svm_reference(x, support_vectors, weight, bias, gamma)
    assert out.shape == (N, 1)
    assert jnp.allclose(out, ref, atol=1e-4, rtol=1e-4), (out, ref)

    # Larger batch: exercises a multi-tile grid, partial last tile (masked store)
    # and the >=2-grid-step split for megacore.
    N2 = 1000
    x2 = jax.random.normal(jax.random.PRNGKey(1), (N2, D), dtype=jnp.float32)
    out2 = jax.block_until_ready(
        kernel_svm_forward(x2, support_vectors, weight, bias, gamma))
    ref2 = kernel_svm_reference(x2, support_vectors, weight, bias, gamma)
    assert out2.shape == (N2, 1)
    assert jnp.allclose(out2, ref2, atol=1e-4, rtol=1e-4)

    print("KERNEL_OK")
</pallas_src>

<mosaic_0001>
module attributes {stable_mosaic.version = 11 : i64} {
  func.func @_svm_kernel(%arg0: i32, %arg1: memref<128x32xf32, #tpu.memory_space<vmem>>, %arg2: memref<32x32xf32, #tpu.memory_space<vmem>>, %arg3: memref<32x1xf32, #tpu.memory_space<vmem>>, %arg4: memref<1x32xf32, #tpu.memory_space<vmem>>, %arg5: memref<1xf32, #tpu.memory_space<smem>>, %arg6: memref<1x128xf32, #tpu.memory_space<vmem>>) attributes {dimension_semantics = [#tpu.dimension_semantics<parallel>], iteration_bounds = array<i64: 1>, scalar_prefetch = 0 : i64, scratch_operands = 0 : i64, tpu.core_type = #tpu.core_type<tc>, window_params = [{transform_indices = @transform_0, window_bounds = array<i64: 128, 32>}, {pipeline_mode = #tpu.pipeline_mode<synchronous>, transform_indices = @transform_1, window_bounds = array<i64: 32, 32>}, {pipeline_mode = #tpu.pipeline_mode<synchronous>, transform_indices = @transform_2, window_bounds = array<i64: 32, 1>}, {pipeline_mode = #tpu.pipeline_mode<synchronous>, transform_indices = @transform_3, window_bounds = array<i64: 1, 32>}, {transform_indices = @transform_4, window_bounds = array<i64: 1>}, {transform_indices = @transform_5, window_bounds = array<i64: 1, 128>}]} {
    %c0 = arith.constant 0 : index
    %c0_0 = arith.constant 0 : index
    %0 = vector.load %arg1[%c0, %c0_0] : memref<128x32xf32, #tpu.memory_space<vmem>>, vector<128x32xf32>
    %1 = tpu.transpose %0, [1, 0] : vector<128x32xf32> -> vector<32x128xf32>
    %c0_1 = arith.constant 0 : index
    %c0_2 = arith.constant 0 : index
    %2 = vector.load %arg2[%c0_1, %c0_2] : memref<32x32xf32, #tpu.memory_space<vmem>>, vector<32x32xf32>
    %cst = arith.constant dense<0.000000e+00> : vector<32x128xf32>
    %3 = tpu.matmul %2, %1, %cst {dimension_numbers = #tpu.dot_dimension_numbers<[1], [0], [0], [1], [0, 0, 1, 1], [], []>} : vector<32x32xf32>, vector<32x128xf32>, vector<32x128xf32> -> vector<32x128xf32>
    %4 = arith.mulf %1, %1 : vector<32x128xf32>
    %cst_3 = arith.constant dense<0.000000e+00> : vector<128xf32>
    %5 = vector.multi_reduction <add>, %4, %cst_3 [0] : vector<32x128xf32> to vector<128xf32>
    %6 = vector.shape_cast %5 : vector<128xf32> to vector<1x128xf32>
    %cst_4 = arith.constant -1.000000e+00 : f32
    %7 = vector.broadcast %cst_4 : f32 to vector<1x128xf32>
    %8 = arith.mulf %6, %7 : vector<1x128xf32>
    %c0_5 = arith.constant 0 : index
    %c0_6 = arith.constant 0 : index
    %9 = vector.load %arg3[%c0_5, %c0_6] : memref<32x1xf32, #tpu.memory_space<vmem>>, vector<32x1xf32>
    %10 = vector.broadcast %9 : vector<32x1xf32> to vector<32x128xf32>
    %11 = arith.addf %3, %10 : vector<32x128xf32>
    %12 = vector.broadcast %8 : vector<1x128xf32> to vector<32x128xf32>
    %13 = arith.addf %11, %12 : vector<32x128xf32>
    %cst_7 = arith.constant 0.000000e+00 : f32
    %14 = vector.broadcast %cst_7 : f32 to vector<32x128xf32>
    %15 = arith.minimumf %13, %14 : vector<32x128xf32>
    %16 = math.exp %15 : vector<32x128xf32>
    %c0_8 = arith.constant 0 : index
    %c0_9 = arith.constant 0 : index
    %17 = vector.load %arg4[%c0_8, %c0_9] : memref<1x32xf32, #tpu.memory_space<vmem>>, vector<1x32xf32>
    %cst_10 = arith.constant dense<0.000000e+00> : vector<1x128xf32>
    %18 = tpu.matmul %17, %16, %cst_10 {dimension_numbers = #tpu.dot_dimension_numbers<[1], [0], [0], [1], [0, 0, 1, 1], [], []>} : vector<1x32xf32>, vector<32x128xf32>, vector<1x128xf32> -> vector<1x128xf32>
    %c0_11 = arith.constant 0 : index
    %19 = memref.load %arg5[%c0_11] : memref<1xf32, #tpu.memory_space<smem>>
    %20 = vector.broadcast %19 : f32 to vector<1x128xf32>
    %21 = arith.addf %18, %20 : vector<1x128xf32>
    %c0_12 = arith.constant 0 : index
    %c0_13 = arith.constant 0 : index
    %22 = vector.load %arg6[%c0_12, %c0_13] : memref<1x128xf32, #tpu.memory_space<vmem>>, vector<1x128xf32>
    tpu.vector_store %arg6[%c0_12, %c0_13], %21 {strides = array<i32>} : memref<1x128xf32, #tpu.memory_space<vmem>>, vector<1x128xf32>,
    return
  }
  func.func @transform_0(%arg0: i32) -> (i32, i32) {
    %c0_i32 = arith.constant 0 : i32
    %c0_i32_0 = arith.constant 0 : i32
    return %arg0, %c0_i32 : i32, i32
  }
  func.func @transform_1(%arg0: i32) -> (i32, i32) {
    %c0_i32 = arith.constant 0 : i32
    %c0_i32_0 = arith.constant 0 : i32
    %c0_i32_1 = arith.constant 0 : i32
    return %c0_i32, %c0_i32_0 : i32, i32
  }
  func.func @transform_2(%arg0: i32) -> (i32, i32) {
    %c0_i32 = arith.constant 0 : i32
    %c0_i32_0 = arith.constant 0 : i32
    %c0_i32_1 = arith.constant 0 : i32
    return %c0_i32, %c0_i32_0 : i32, i32
  }
  func.func @transform_3(%arg0: i32) -> (i32, i32) {
    %c0_i32 = arith.constant 0 : i32
    %c0_i32_0 = arith.constant 0 : i32
    %c0_i32_1 = arith.constant 0 : i32
    return %c0_i32, %c0_i32_0 : i32, i32
  }
  func.func @transform_4(%arg0: i32) -> i32 {
    %c0_i32 = arith.constant 0 : i32
    %c0_i32_0 = arith.constant 0 : i32
    return %c0_i32 : i32
  }
  func.func @transform_5(%arg0: i32) -> (i32, i32) {
    %c0_i32 = arith.constant 0 : i32
    %c0_i32_0 = arith.constant 0 : i32
    return %c0_i32, %arg0 : i32, i32
  }
}

</mosaic_0001>

<llo_original>
// kernel: tpu_custom_call.1
$region0: #{tpu_custom_call.1}
  #allocation0 [shape = 'u32[]', space=smem, size = 0x4, offset = 0x4, fixed_abs, tag = 'smem constant byte address 0x4 - core index']
  #allocation1 [shape = 'u32[144,128]{1,0:T(1,128)}', space=vmem, size = 0x12000, scoped, tag = 'internal scratch']
  #allocation2 [shape = 'f32[1]{0:T(128)S(6)}', space=smem, size = 0x200, scoped, tag = 'scoped memory for tpu_custom_call.1']
  %s0 = inlined_call_operand.vmem [shape: f32[8,32], index: 0, kind: input, shape index: {}]
  %s1 = inlined_call_operand.vmem [shape: f32[32,32], index: 1, kind: input, shape index: {}]
  %s2 = inlined_call_operand.vmem [shape: f32[32,1], index: 2, kind: input, shape index: {}]
  %s3 = inlined_call_operand.vmem [shape: f32[1,32], index: 3, kind: input, shape index: {}]
  %s4 = inlined_call_operand.<no memory space> [shape: f32[1], index: 4, kind: input, shape index: {}]
  %s5 = inlined_call_operand.hbm [shape: f32[1,8], index: 5, kind: output, shape index: {}]
  %s6 = sld [smem:[#allocation0]]
  $region30: #{tpu_custom_call.1} parent=0
    _
  %s8 = ssub.s32 1, %s6
  %s9 = scalar_select 0, %s8, %s6
  %10 = sst [smem:[#allocation2]] %s4
  $region1: #{tpu_custom_call.1} parent=0
    #allocation3 [shape = 'u8[512]{0}', space=vmem, size = 0x400, scoped, tag = 'output window, operand 0, single buffered']
    #allocation4 [shape = 's32[1]{0}', space=sflag, size = 0x4, scoped, tag = 'scoped memory for tpu_custom_call.1']
    %11 = vsyncpa [#allocation4], 0
    // Predicated region
    $region2: #{tpu_custom_call.1} parent=1 // pred_check
      _
    $region3: #{tpu_custom_call.1} parent=1 // pred_check_branch
      %13 = sbr.rel (0) target = $region5
    $region4: #{tpu_custom_call.1} parent=1 // pred_region
      _
    $region5: #{tpu_custom_call.1} parent=1 // pred_fallthru
      _
    // Predicated region
    $region6: #{tpu_custom_call.1} parent=1 // pred_check
      _
    $region7: #{tpu_custom_call.1} parent=1 // pred_check_branch
      %15 = sbr.rel (0) target = $region9
    $region8: #{tpu_custom_call.1} parent=1 // pred_region
      _
    $region9: #{tpu_custom_call.1} parent=1 // pred_fallthru
      _
    // Predicated region
    $region10: #{tpu_custom_call.1} parent=1 // pred_check
      _
    $region11: #{tpu_custom_call.1} parent=1 // pred_check_branch
      %17 = sbr.rel (0) target = $region13
    $region12: #{tpu_custom_call.1} parent=1 // pred_region
      _
    $region13: #{tpu_custom_call.1} parent=1 // pred_fallthru
      _
    // Predicated region
    $region14: #{tpu_custom_call.1} parent=1 // pred_check
      _
    $region15: #{tpu_custom_call.1} parent=1 // pred_check_branch
      %19 = sbr.rel (0) target = $region17
    $region16: #{tpu_custom_call.1} parent=1 // pred_region
      _
    $region17: #{tpu_custom_call.1} parent=1 // pred_fallthru
      _
    // Predicated region
    $region18: #{tpu_custom_call.1} parent=1 // pred_check
      _
    $region19: #{tpu_custom_call.1} parent=1 // pred_check_branch
      %21 = sbr.rel (0) target = $region21
    $region20: #{tpu_custom_call.1} parent=1 // pred_region
      _
    $region21: #{tpu_custom_call.1} parent=1 // pred_fallthru
      _
    %v22 = vld [vmem:[%s0] sm:$0xff]
    %v23 = vld [vmem:[%s0 + $0x8] sm:$0xff]
    %v24 = vld [vmem:[%s0 + $0x10] sm:$0xff]
    %v25 = vld [vmem:[%s0 + $0x18] sm:$0xff]
    %v26 = vld [vmem:[%s0 + $0x20] sm:$0xff]
    %v27 = vld [vmem:[%s0 + $0x28] sm:$0xff]
    %v28 = vld [vmem:[%s0 + $0x30] sm:$0xff]
    %v29 = vld [vmem:[%s0 + $0x38] sm:$0xff]
    %v30 = vld [vmem:[%s0 + $0x40] sm:$0xff]
    %v31 = vld [vmem:[%s0 + $0x48] sm:$0xff]
    %v32 = vld [vmem:[%s0 + $0x50] sm:$0xff]
    %v33 = vld [vmem:[%s0 + $0x58] sm:$0xff]
    %v34 = vld [vmem:[%s0 + $0x60] sm:$0xff]
    %v35 = vld [vmem:[%s0 + $0x68] sm:$0xff]
    %v36 = vld [vmem:[%s0 + $0x70] sm:$0xff]
    %v37 = vld [vmem:[%s0 + $0x78] sm:$0xff]
    %38 = vxpose.xlu0.b32.start [1/16] %v22, 128
    %39 = vxpose.xlu0.b32.cont [2/16] %v23, 128
    %40 = vxpose.xlu0.b32.cont [3/16] %v24, 128
    %41 = vxpose.xlu0.b32.cont [4/16] %v25, 128
    %42 = vxpose.xlu0.b32.cont [5/16] %v26, 128
    %43 = vxpose.xlu0.b32.cont [6/16] %v27, 128
    %44 = vxpose.xlu0.b32.cont [7/16] %v28, 128
    %45 = vxpose.xlu0.b32.cont [8/16] %v29, 128
    %46 = vxpose.xlu0.b32.cont [9/16] %v30, 128
    %47 = vxpose.xlu0.b32.cont [10/16] %v31, 128
    %48 = vxpose.xlu0.b32.cont [11/16] %v32, 128
    %49 = vxpose.xlu0.b32.cont [12/16] %v33, 128
    %50 = vxpose.xlu0.b32.cont [13/16] %v34, 128
    %51 = vxpose.xlu0.b32.cont [14/16] %v35, 128
    %52 = vxpose.xlu0.b32.cont [15/16] %v36, 128
    %53 = vxpose.xlu0.b32.end [16/16] %v37, 128
    %v54 = vpop.trf.xlu0
    %v55 = vpop.trf.xlu0
    %v56 = vpop.trf.xlu0
    %v57 = vpop.trf.xlu0
    %v58 = vpop.trf.xlu0
    %v59 = vpop.trf.xlu0
    %v60 = vpop.trf.xlu0
    %v61 = vpop.trf.xlu0
    %v62 = vpop.trf.xlu0
    %v63 = vpop.trf.xlu0
    %v64 = vpop.trf.xlu0
    %v65 = vpop.trf.xlu0
    %v66 = vpop.trf.xlu0
    %v67 = vpop.trf.xlu0
    %v68 = vpop.trf.xlu0
    %v69 = vpop.trf.xlu0
    %v70 = vld [vmem:[%s1] sm:$0xff]
    %v71 = vld [vmem:[%s1 + $0x8] sm:$0xff]
    %v72 = vld [vmem:[%s1 + $0x10] sm:$0xff]
    %v73 = vld [vmem:[%s1 + $0x18] sm:$0xff]
    %v74 = vmul.f32 %v54, %v54
    %v75 = vmul.f32 %v55, %v55
    %v76 = vmul.f32 %v56, %v56
    %v77 = vmul.f32 %v57, %v57
    %v78 = vadd.f32 %v74, %v75
    %v79 = vadd.f32 %v78, %v76
    %v80 = vadd.f32 %v79, %v77
    %v81 = vrot.slane %v80, 4
    %v82 = vadd.f32 %v80, %v81
    %v83 = vrot.slane %v82, 2
    %v84 = vadd.f32 %v82, %v83
    %v85 = vrot.slane %v84, 1
    %v86 = vadd.f32 %v84, %v85
    %v87 = vmul.f32 %v86, -1.0
    %v88 = vld [vmem:[%s2] sm:$0xff]
    %v89 = vld [vmem:[%s2 + $0x8] sm:$0xff]
    %v90 = vld [vmem:[%s2 + $0x10] sm:$0xff]
    %v91 = vld [vmem:[%s2 + $0x18] sm:$0xff]
    %93 = vset.pattern.permute.xlu0 0
    %94 = vperm.xlu0 %93, %v88
    %v95 = vpop.permute.xlu0 %94
    %98 = vset.pattern.permute.xlu0 0
    %99 = vperm.xlu0 %98, %v89
    %v100 = vpop.permute.xlu0 %99
    %103 = vset.pattern.permute.xlu0 0
    %104 = vperm.xlu0 %103, %v90
    %v105 = vpop.permute.xlu0 %104
    %108 = vset.pattern.permute.xlu0 0
    %109 = vperm.xlu0 %108, %v91
    %v110 = vpop.permute.xlu0 %109
    %vm112 = vcmask 261120
    %v114 = vsel %vm112, %v70, 0
    %v117 = vsel %vm112, %v71, 0
    %v120 = vsel %vm112, %v72, 0
    %v123 = vsel %vm112, %v73, 0
    %125 = vmatprep.subr.mxu0 0.0
    %126 = vmatpush1.msra.mxu0 %v54
    %127 = vmatprep.subr.mxu0 0.0
    %128 = vmatpush1.msra.mxu0 %v55
    %129 = vmatprep.subr.mxu0 0.0
    %130 = vmatpush1.msra.mxu0 %v56
    %131 = vmatprep.subr.mxu0 0.0
    %132 = vmatpush1.msra.mxu0 %v57
    %133 = vmatprep.subr.mxu0 0.0
    %134 = vmatpush1.msra.mxu0 0.0
    %135 = vmatprep.subr.mxu0 0.0
    %136 = vmatpush1.msra.mxu0 0.0
    %137 = vmatprep.subr.mxu0 0.0
    %138 = vmatpush1.msra.mxu0 0.0
    %139 = vmatprep.subr.mxu0 0.0
    %140 = vmatpush1.msra.mxu0 0.0
    %141 = vmatprep.subr.mxu0 0.0
    %142 = vmatpush1.msra.mxu0 0.0
    %143 = vmatprep.subr.mxu0 0.0
    %144 = vmatpush1.msra.mxu0 0.0
    %145 = vmatprep.subr.mxu0 0.0
    %146 = vmatpush1.msra.mxu0 0.0
    %147 = vmatprep.subr.mxu0 0.0
    %148 = vmatpush1.msra.mxu0 0.0
    %149 = vmatprep.subr.mxu0 0.0
    %150 = vmatpush1.msra.mxu0 0.0
    %151 = vmatprep.subr.mxu0 0.0
    %152 = vmatpush1.msra.mxu0 0.0
    %153 = vmatprep.subr.mxu0 0.0
    %154 = vmatpush1.msra.mxu0 0.0
    %155 = vmatprep.subr.mxu0 0.0
    %156 = vmatpush1.msra.mxu0 0.0
    %157 = vmatprep.subr.mxu0 0.0
    %158 = vmatpush1.msra.mxu0 0.0
    %159 = vmatprep.subr.mxu0 0.0
    %160 = vmatpush1.msra.mxu0 0.0
    %161 = vmatprep.subr.mxu0 0.0
    %162 = vmatpush1.msra.mxu0 0.0
    %163 = vmatprep.subr.mxu0 0.0
    %164 = vmatpush1.msra.mxu0 0.0
    %165 = vmatprep.subr.mxu0 0.0
    %166 = vmatpush1.msra.mxu0 0.0
    %167 = vmatprep.subr.mxu0 0.0
    %168 = vmatpush1.msra.mxu0 0.0
    %169 = vmatprep.subr.mxu0 0.0
    %170 = vmatpush1.msra.mxu0 0.0
    %171 = vmatprep.subr.mxu0 0.0
    %172 = vmatpush1.msra.mxu0 0.0
    %173 = vmatprep.subr.mxu0 0.0
    %174 = vmatpush1.msra.mxu0 0.0
    %175 = vmatprep.subr.mxu0 0.0
    %176 = vmatpush1.msra.mxu0 0.0
    %177 = vmatprep.subr.mxu0 0.0
    %178 = vmatpush1.msra.mxu0 0.0
    %179 = vmatprep.subr.mxu0 0.0
    %180 = vmatpush1.msra.mxu0 0.0
    %181 = vmatprep.subr.mxu0 0.0
    %182 = vmatpush1.msra.mxu0 0.0
    %183 = vmatprep.subr.mxu0 0.0
    %184 = vmatpush1.msra.mxu0 0.0
    %185 = vmatprep.subr.mxu0 0.0
    %186 = vmatpush1.msra.mxu0 0.0
    %187 = vmatprep.subr.mxu0 0.0
    %188 = vmatpush1.msra.mxu0 0.0
    %189 = vmatprep.mubr.f32.mxu0 0.0
    %190 = vmatmul.mubr.f32.gmra.mrb[0].mxu0 %v114
    %v191 = vpop.f32.mrb[0].mxu0
    %v192 = vadd.f32 %v95, %v191
    %v193 = vpop.f32.mrb[0].mxu0
    %194 = vmatprep.mubr.f32.mxu0 0.0
    %195 = vmatmul.mubr.f32.gmra.mrb[0].mxu0 %v117
    %v196 = vpop.f32.mrb[0].mxu0
    %v197 = vadd.f32 %v100, %v196
    %v198 = vpop.f32.mrb[0].mxu0
    %199 = vmatprep.mubr.f32.mxu0 0.0
    %200 = vmatmul.mubr.f32.gmra.mrb[0].mxu0 %v120
    %v201 = vpop.f32.mrb[0].mxu0
    %v202 = vadd.f32 %v105, %v201
    %v203 = vpop.f32.mrb[0].mxu0
    %204 = vmatprep.mubr.f32.mxu0 0.0
    %205 = vmatmul.mubr.f32.gmra.mrb[0].mxu0 %v123
    %v206 = vpop.f32.mrb[0].mxu0
    %v207 = vadd.f32 %v110, %v206
    %v208 = vpop.f32.mrb[0].mxu0
    %209 = vdwg.mxu0
    %v210 = vadd.f32 %v192, %v87
    %v211 = vadd.f32 %v197, %v87
    %v212 = vadd.f32 %v202, %v87
    %v213 = vadd.f32 %v207, %v87
    %v214 = vmin.f32 %v210, 0.0
    %v215 = vmin.f32 %v211, 0.0
    %v216 = vmin.f32 %v212, 0.0
    %v217 = vmin.f32 %v213, 0.0
    %v218 = vmul.f32 %v214, 1.442695
    %v219 = vpow.pop %v218
    %v220 = vmul.f32 %v215, 1.442695
    %v221 = vpow.pop %v220
    %v222 = vmul.f32 %v216, 1.442695
    %v223 = vpow.pop %v222
    %v224 = vmul.f32 %v217, 1.442695
    %v225 = vpow.pop %v224
    %v226 = vld [vmem:[%s3] sm:$0x1]
    %s227 = sld [smem:[#allocation2]]
    %v228 = vstv %s227
    %v230 = vsel %vm112, %v226, 0
    %232 = vmatprep.subr.mxu0 0.0
    %233 = vmatpush1.msra.mxu0 %v219
    %234 = vmatprep.subr.mxu0 0.0
    %235 = vmatpush1.msra.mxu0 %v221
    %236 = vmatprep.subr.mxu0 0.0
    %237 = vmatpush1.msra.mxu0 %v223
    %238 = vmatprep.subr.mxu0 0.0
    %239 = vmatpush1.msra.mxu0 %v225
    %240 = vmatprep.subr.mxu0 0.0
    %241 = vmatpush1.msra.mxu0 0.0
    %242 = vmatprep.subr.mxu0 0.0
    %243 = vmatpush1.msra.mxu0 0.0
    %244 = vmatprep.subr.mxu0 0.0
    %245 = vmatpush1.msra.mxu0 0.0
    %246 = vmatprep.subr.mxu0 0.0
    %247 = vmatpush1.msra.mxu0 0.0
    %248 = vmatprep.subr.mxu0 0.0
    %249 = vmatpush1.msra.mxu0 0.0
    %250 = vmatprep.subr.mxu0 0.0
    %251 = vmatpush1.msra.mxu0 0.0
    %252 = vmatprep.subr.mxu0 0.0
    %253 = vmatpush1.msra.mxu0 0.0
    %254 = vmatprep.subr.mxu0 0.0
    %255 = vmatpush1.msra.mxu0 0.0
    %256 = vmatprep.subr.mxu0 0.0
    %257 = vmatpush1.msra.mxu0 0.0
    %258 = vmatprep.subr.mxu0 0.0
    %259 = vmatpush1.msra.mxu0 0.0
    %260 = vmatprep.subr.mxu0 0.0
    %261 = vmatpush1.msra.mxu0 0.0
    %262 = vmatprep.subr.mxu0 0.0
    %263 = vmatpush1.msra.mxu0 0.0
    %264 = vmatprep.subr.mxu0 0.0
    %265 = vmatpush1.msra.mxu0 0.0
    %266 = vmatprep.subr.mxu0 0.0
    %267 = vmatpush1.msra.mxu0 0.0
    %268 = vmatprep.subr.mxu0 0.0
    %269 = vmatpush1.msra.mxu0 0.0
    %270 = vmatprep.subr.mxu0 0.0
    %271 = vmatpush1.msra.mxu0 0.0
    %272 = vmatprep.subr.mxu0 0.0
    %273 = vmatpush1.msra.mxu0 0.0
    %274 = vmatprep.subr.mxu0 0.0
    %275 = vmatpush1.msra.mxu0 0.0
    %276 = vmatprep.subr.mxu0 0.0
    %277 = vmatpush1.msra.mxu0 0.0
    %278 = vmatprep.subr.mxu0 0.0
    %279 = vmatpush1.msra.mxu0 0.0
    %280 = vmatprep.subr.mxu0 0.0
    %281 = vmatpush1.msra.mxu0 0.0
    %282 = vmatprep.subr.mxu0 0.0
    %283 = vmatpush1.msra.mxu0 0.0
    %284 = vmatprep.subr.mxu0 0.0
    %285 = vmatpush1.msra.mxu0 0.0
    %286 = vmatprep.subr.mxu0 0.0
    %287 = vmatpush1.msra.mxu0 0.0
    %288 = vmatprep.subr.mxu0 0.0
    %289 = vmatpush1.msra.mxu0 0.0
    %290 = vmatprep.subr.mxu0 0.0
    %291 = vmatpush1.msra.mxu0 0.0
    %292 = vmatprep.subr.mxu0 0.0
    %293 = vmatpush1.msra.mxu0 0.0
    %294 = vmatprep.subr.mxu0 0.0
    %295 = vmatpush1.msra.mxu0 0.0
    %296 = vmatprep.mubr.f32.mxu0 0.0
    %297 = vmatmul.mubr.f32.gmra.mrb[0].mxu0 %v230
    %v298 = vpop.f32.mrb[0].mxu0
    %v299 = vadd.f32 %v228, %v298
    %v300 = vpop.f32.mrb[0].mxu0
    %301 = vdwg.mxu0
    %302 = vst [vmem:[#allocation3] sm:$0x1] %v299
    // Predicated region
    $region22: #{tpu_custom_call.1} parent=1 // pred_check
      _
    $region23: #{tpu_custom_call.1} parent=1 // pred_check_branch
      %304 = sbr.rel (0) target = $region25
    $region24: #{tpu_custom_call.1} parent=1 // pred_region
      %s306 = ssub.s32 16, 16
      %307 = vsyncadd [#allocation4], %s306
      %s309 = sshll.u32 [#allocation3], 4
      %s310 = int_to_ptr.vmem [resolvable:$true] %s309
      %312 = dma.vmem_to_hbm [thread:$0]  %s310, 16, %s5, [#allocation4]
    $region25: #{tpu_custom_call.1} parent=1 // pred_fallthru
      _
    // Predicated region
    $region26: #{tpu_custom_call.1} parent=1 // pred_check
      _
    $region27: #{tpu_custom_call.1} parent=1 // pred_check_branch
      %314 = sbr.rel (0) target = $region29
    $region28: #{tpu_custom_call.1} parent=1 // pred_region
      %315 = dma.done [#allocation4], 16
    $region29: #{tpu_custom_call.1} parent=1 // pred_fallthru
      _
    %316 = vsyncpa [#allocation4], 1

</llo_original>
